<compile_context>
chip_gen: v5e
topology: v5e:2x2
jax: 0.10.0
libtpu: 0.0.40
codegen_flags: <defaults>
</compile_context>

<pallas_src>
import functools

import jax
import jax.numpy as jnp
import numpy as np
from jax.experimental import pallas as pl
from jax.experimental.pallas import tpu as pltpu


# ----------------------------------------------------------------------------
# Kernel: one fused pass  bilinear + linear + constant -> exp -> prefactor -> sum
# ----------------------------------------------------------------------------
def _two_body_kernel(c1_ref, c2_ref, pi1_ref, pi2_ref, nu1_ref, nu2_ref,
                     g1_ref, g2_ref, gm_ref, w_ref, v_ref, b_ref, out_ref):
    c1 = c1_ref[...]                                   # (Bt, L*S) lane-dense
    c2 = c2_ref[...]                                   # (Bt, L*S)
    bt, ls = c1.shape

    # Per-pair outer product on the VPU, flattened lane-dense.  The "same-l
    # only" constraint lives in g1 (zero rows), so one (Bt, LS*LS)@(LS*LS, M)
    # MXU push replaces Bt tiny batched matmuls + reshape + transpose.
    x = (c1[:, :, None] * c2[:, None, :]).reshape(bt, ls * ls)

    # Gammas arrive pre-transposed, pre-tiled over L and pre-scaled by the
    # code-length norm -> no in-kernel relayouts or scaling.
    t1 = jnp.dot(x, g1_ref[...], preferred_element_type=jnp.float32)        # (Bt, M)
    t2 = jnp.dot(c1 + c2, g2_ref[...], preferred_element_type=jnp.float32)  # (Bt, M)
    e = jnp.exp(t1 + t2 + gm_ref[...])                                      # (Bt, M)

    # Fused prefactor provider; 1/M of the component-mean is folded into
    # w / V / b on the host, so a plain sum finishes the reduction.
    pref = (pi1_ref[...] * pi2_ref[...]) * w_ref[...] + b_ref[...]          # (Bt, M)
    pref = pref + jnp.dot(nu1_ref[...] + nu2_ref[...], v_ref[...],
                          preferred_element_type=jnp.float32)

    # Lane-dense (1, Bt) store (avoids masked width-1 vst).
    out_ref[...] = jnp.sum(e * pref, axis=-1)[None, :]


# ----------------------------------------------------------------------------
# Host-side one-time parameter transforms (symmetrize, transpose, fold norms).
# ----------------------------------------------------------------------------
def prepare_params(gamma_mss_unconstrained, gamma_ms, gamma_m,
                   w_m, v_jm, b_m, code_length, code_length_reduction_type):
    m, s, _ = gamma_mss_unconstrained.shape
    l = code_length
    if code_length_reduction_type == 'mean':
        norm = 1.0 / l
    elif code_length_reduction_type == 'sum':
        norm = 1.0
    else:
        raise ValueError('Bad code_length_reduction_type')

    # symmetrize (the gamma_mss property of the reference module)
    gamma_mss = 0.5 * (gamma_mss_unconstrained
                       + jnp.transpose(gamma_mss_unconstrained, (0, 2, 1)))

    # Block-diagonal (over l) embedding of the bilinear form, pre-transposed to
    # (K, M) with K = (L*S)^2 and the code-length norm folded in:
    #   g1[(l1*S+s)*L*S + (l2*S+r), m] = norm * gamma_mss[m, s, r] * (l1 == l2)
    eye_l = jnp.eye(l, dtype=jnp.float32)
    g1_km = jnp.einsum('ab,msr->asbrm', eye_l,
                       norm * gamma_mss).reshape(l * s * l * s, m)

    # Linear term, tiled over L and pre-transposed: g2[(l*S+s), m] = norm*gamma_ms[m,s]
    g2_km = jnp.tile((norm * gamma_ms).T, (l, 1))                  # (L*S, M)
    gm_1m = gamma_m.reshape(1, m)

    # Prefactor-provider parameters with the 1/M of the final mean folded in.
    inv_m = 1.0 / m
    w_1m = (inv_m * w_m).reshape(1, m)
    v_scaled_jm = inv_m * v_jm
    b_1m = (inv_m * b_m).reshape(1, m)

    return (g1_km.astype(jnp.float32), g2_km.astype(jnp.float32),
            gm_1m.astype(jnp.float32), w_1m.astype(jnp.float32),
            v_scaled_jm.astype(jnp.float32), b_1m.astype(jnp.float32))


# ----------------------------------------------------------------------------
# Forward wrapper (single jit: tiny reshapes + one pallas_call).
# TODO(synk): only a single batch dimension is supported here; the reference
# allows arbitrary (possibly empty) batch shapes.
# ----------------------------------------------------------------------------
@jax.jit
def two_body_forward(c_1_bls, nu_1_bj, pi_1_b, c_2_bls, nu_2_bj, pi_2_b, params):
    g1_km, g2_km, gm_1m, w_1m, v_scaled_jm, b_1m = params
    b, l, s = c_1_bls.shape
    ls = l * s
    k = ls * ls
    j, m = v_scaled_jm.shape

    # lane-dense inputs (last dim L*S instead of S)
    c1 = c_1_bls.reshape(b, ls).astype(jnp.float32)
    c2 = c_2_bls.reshape(b, ls).astype(jnp.float32)
    pi1 = pi_1_b.reshape(b, 1).astype(jnp.float32)
    pi2 = pi_2_b.reshape(b, 1).astype(jnp.float32)
    nu1 = (jnp.zeros((b, j), jnp.float32) if nu_1_bj is None
           else nu_1_bj.astype(jnp.float32))
    nu2 = (jnp.zeros((b, j), jnp.float32) if nu_2_bj is None
           else nu_2_bj.astype(jnp.float32))

    # Batch tiling: single block for small B, 512-row tiles (lane/sublane
    # aligned) for large B; the grid axis is "parallel" (megacore / 2x v7x TCs).
    b_tile = b if b <= 512 else 512
    grid = (pl.cdiv(b, b_tile),)
    bmap = lambda i: (i, 0)        # batch-sliced operands
    pmap = lambda i: (0, 0)        # parameters, resident across the grid

    out = pl.pallas_call(
        _two_body_kernel,
        out_shape=jax.ShapeDtypeStruct((1, b), jnp.float32),
        grid=grid,
        in_specs=[
            pl.BlockSpec((b_tile, ls), bmap),   # c1
            pl.BlockSpec((b_tile, ls), bmap),   # c2
            pl.BlockSpec((b_tile, 1), bmap),    # pi1
            pl.BlockSpec((b_tile, 1), bmap),    # pi2
            pl.BlockSpec((b_tile, j), bmap),    # nu1
            pl.BlockSpec((b_tile, j), bmap),    # nu2
            pl.BlockSpec((k, m), pmap),         # g1 (block-diag bilinear, pre-scaled)
            pl.BlockSpec((ls, m), pmap),        # g2 (linear, pre-scaled)
            pl.BlockSpec((1, m), pmap),         # gamma_m
            pl.BlockSpec((1, m), pmap),         # w / M
            pl.BlockSpec((j, m), pmap),         # V / M
            pl.BlockSpec((1, m), pmap),         # b / M
        ],
        out_specs=pl.BlockSpec((1, b_tile), lambda i: (0, i)),
        compiler_params=pltpu.CompilerParams(
            dimension_semantics=("parallel",)),
    )(c1, c2, pi1, pi2, nu1, nu2, g1_km, g2_km, gm_1m, w_1m, v_scaled_jm, b_1m)
    return out[0]


# ----------------------------------------------------------------------------
# Concrete TwoBodyPotentialPrefactor (the reference class is abstract):
#   f_m(pi1, nu1; pi2, nu2) = w_m * (pi1*pi2) + (nu1+nu2) @ V[:, m] + b_m
# (symmetric in the two arguments). Used only for the pure-JAX reference;
# the same form is fused inside the kernel above.
# ----------------------------------------------------------------------------
def prefactor_provider(nu_1_bj, pi_1_b, nu_2_bj, pi_2_b, w_m, v_jm, b_m):
    pref = (pi_1_b * pi_2_b)[:, None] * w_m[None, :] + b_m[None, :]
    if nu_1_bj is not None and nu_2_bj is not None:
        pref = pref + (nu_1_bj + nu_2_bj) @ v_jm
    return pref.astype(jnp.float32)


def reference_forward(c1, c2, gamma_mss, gamma_ms, gamma_m, prefactors_bm, norm):
    t1 = jnp.einsum('bls,blr,msr->bm', c1, c2, gamma_mss)
    t2 = jnp.einsum('bls,ms->bm', c1 + c2, gamma_ms)
    e = jnp.exp(norm * t1 + norm * t2 + gamma_m[None, :])
    return jnp.mean(e * prefactors_bm, axis=-1)


if __name__ == "__main__":
    # ---------------- sizes (small, consistent with the module) -------------
    B = 8            # batch
    L = 8            # code_length
    S = 4            # n_symbols
    M = 8            # n_components
    J = 4            # n_meta
    reduction = 'mean'

    init_bilinear_diag_scale = 0.5
    init_bilinear_rand_scale = 0.05
    init_linear_scale = 0.1
    init_constant_scale = 0.1

    key = jax.random.PRNGKey(0)
    keys = jax.random.split(key, 10)

    # -------------------- deterministic parameter init ----------------------
    gamma_mss_unconstrained = (
        init_bilinear_diag_scale
        * jnp.broadcast_to(jnp.eye(S, dtype=jnp.float32)[None], (M, S, S))
        + init_bilinear_rand_scale
        * jax.random.normal(keys[0], (M, S, S), dtype=jnp.float32)
    )
    gamma_ms = init_linear_scale * jax.random.normal(keys[1], (M, S), jnp.float32)
    gamma_m = init_constant_scale * jax.random.normal(keys[2], (M,), jnp.float32)

    # prefactor-provider parameters
    w_m = jax.random.normal(keys[3], (M,), jnp.float32) * 0.1 + 1.0
    v_jm = jax.random.normal(keys[4], (J, M), jnp.float32) * 0.05
    b_m = jnp.ones((M,), jnp.float32)

    # one-time parameter transforms (transpose / tile / fold norm and 1/M)
    params = prepare_params(gamma_mss_unconstrained, gamma_ms, gamma_m,
                            w_m, v_jm, b_m, L, reduction)

    # ------------------------------ inputs ----------------------------------
    c1_logits = jax.random.normal(keys[5], (B, L, S), jnp.float32)
    c2_logits = jax.random.normal(keys[6], (B, L, S), jnp.float32)
    c_1_bls = jax.nn.softmax(c1_logits, axis=-1)
    c_2_bls = jax.nn.softmax(c2_logits, axis=-1)
    nu_1_bj = jax.random.normal(keys[7], (B, J), jnp.float32)
    nu_2_bj = jax.random.normal(keys[8], (B, J), jnp.float32)
    pi_1_b = jax.nn.sigmoid(jax.random.normal(keys[9], (B,), jnp.float32))
    pi_2_b = jax.nn.sigmoid(jax.random.normal(keys[9] + 1, (B,), jnp.float32))

    # ------------------------------ run kernel ------------------------------
    out_b = two_body_forward(c_1_bls, nu_1_bj, pi_1_b,
                             c_2_bls, nu_2_bj, pi_2_b, params)
    out_b = jax.block_until_ready(out_b)

    # ------------------------------ verify ----------------------------------
    norm = 1.0 / L if reduction == 'mean' else 1.0
    gamma_mss = 0.5 * (gamma_mss_unconstrained
                       + jnp.transpose(gamma_mss_unconstrained, (0, 2, 1)))
    prefactors_bm = prefactor_provider(nu_1_bj, pi_1_b, nu_2_bj, pi_2_b,
                                       w_m, v_jm, b_m)
    ref_b = reference_forward(c_1_bls, c_2_bls, gamma_mss, gamma_ms, gamma_m,
                              prefactors_bm, norm)
    np.testing.assert_allclose(np.asarray(out_b), np.asarray(ref_b),
                               rtol=1e-4, atol=1e-6)

    print("KERNEL_OK")
</pallas_src>

<mosaic_0001>
module attributes {stable_mosaic.version = 11 : i64} {
  func.func @_two_body_kernel(%arg0: i32, %arg1: memref<8x32xf32, #tpu.memory_space<vmem>>, %arg2: memref<8x32xf32, #tpu.memory_space<vmem>>, %arg3: memref<8x1xf32, #tpu.memory_space<vmem>>, %arg4: memref<8x1xf32, #tpu.memory_space<vmem>>, %arg5: memref<8x4xf32, #tpu.memory_space<vmem>>, %arg6: memref<8x4xf32, #tpu.memory_space<vmem>>, %arg7: memref<1024x8xf32, #tpu.memory_space<vmem>>, %arg8: memref<32x8xf32, #tpu.memory_space<vmem>>, %arg9: memref<1x8xf32, #tpu.memory_space<vmem>>, %arg10: memref<1x8xf32, #tpu.memory_space<vmem>>, %arg11: memref<4x8xf32, #tpu.memory_space<vmem>>, %arg12: memref<1x8xf32, #tpu.memory_space<vmem>>, %arg13: memref<1x8xf32, #tpu.memory_space<vmem>>) attributes {dimension_semantics = [#tpu.dimension_semantics<parallel>], iteration_bounds = array<i64: 1>, scalar_prefetch = 0 : i64, scratch_operands = 0 : i64, tpu.core_type = #tpu.core_type<tc>, window_params = [{transform_indices = @transform_0, window_bounds = array<i64: 8, 32>}, {transform_indices = @transform_1, window_bounds = array<i64: 8, 32>}, {transform_indices = @transform_2, window_bounds = array<i64: 8, 1>}, {transform_indices = @transform_3, window_bounds = array<i64: 8, 1>}, {transform_indices = @transform_4, window_bounds = array<i64: 8, 4>}, {transform_indices = @transform_5, window_bounds = array<i64: 8, 4>}, {pipeline_mode = #tpu.pipeline_mode<synchronous>, transform_indices = @transform_6, window_bounds = array<i64: 1024, 8>}, {pipeline_mode = #tpu.pipeline_mode<synchronous>, transform_indices = @transform_7, window_bounds = array<i64: 32, 8>}, {pipeline_mode = #tpu.pipeline_mode<synchronous>, transform_indices = @transform_8, window_bounds = array<i64: 1, 8>}, {pipeline_mode = #tpu.pipeline_mode<synchronous>, transform_indices = @transform_9, window_bounds = array<i64: 1, 8>}, {pipeline_mode = #tpu.pipeline_mode<synchronous>, transform_indices = @transform_10, window_bounds = array<i64: 4, 8>}, {pipeline_mode = #tpu.pipeline_mode<synchronous>, transform_indices = @transform_11, window_bounds = array<i64: 1, 8>}, {transform_indices = @transform_12, window_bounds = array<i64: 1, 8>}]} {
    %c0 = arith.constant 0 : index
    %c0_0 = arith.constant 0 : index
    %0 = vector.load %arg1[%c0, %c0_0] : memref<8x32xf32, #tpu.memory_space<vmem>>, vector<8x32xf32>
    %c0_1 = arith.constant 0 : index
    %c0_2 = arith.constant 0 : index
    %1 = vector.load %arg2[%c0_1, %c0_2] : memref<8x32xf32, #tpu.memory_space<vmem>>, vector<8x32xf32>
    %2 = vector.shape_cast %0 : vector<8x32xf32> to vector<8x32x1xf32>
    %3 = vector.shape_cast %1 : vector<8x32xf32> to vector<8x1x32xf32>
    %4 = vector.broadcast %2 : vector<8x32x1xf32> to vector<8x32x32xf32>
    %5 = vector.broadcast %3 : vector<8x1x32xf32> to vector<8x32x32xf32>
    %6 = arith.mulf %4, %5 : vector<8x32x32xf32>
    %7 = vector.shape_cast %6 : vector<8x32x32xf32> to vector<8x1024xf32>
    %c0_3 = arith.constant 0 : index
    %c0_4 = arith.constant 0 : index
    %8 = vector.load %arg7[%c0_3, %c0_4] : memref<1024x8xf32, #tpu.memory_space<vmem>>, vector<1024x8xf32>
    %cst = arith.constant dense<0.000000e+00> : vector<8x8xf32>
    %9 = tpu.matmul %7, %8, %cst {dimension_numbers = #tpu.dot_dimension_numbers<[1], [0], [0], [1], [0, 0, 1, 1], [], []>} : vector<8x1024xf32>, vector<1024x8xf32>, vector<8x8xf32> -> vector<8x8xf32>
    %10 = arith.addf %0, %1 : vector<8x32xf32>
    %c0_5 = arith.constant 0 : index
    %c0_6 = arith.constant 0 : index
    %11 = vector.load %arg8[%c0_5, %c0_6] : memref<32x8xf32, #tpu.memory_space<vmem>>, vector<32x8xf32>
    %cst_7 = arith.constant dense<0.000000e+00> : vector<8x8xf32>
    %12 = tpu.matmul %10, %11, %cst_7 {dimension_numbers = #tpu.dot_dimension_numbers<[1], [0], [0], [1], [0, 0, 1, 1], [], []>} : vector<8x32xf32>, vector<32x8xf32>, vector<8x8xf32> -> vector<8x8xf32>
    %13 = arith.addf %9, %12 : vector<8x8xf32>
    %c0_8 = arith.constant 0 : index
    %c0_9 = arith.constant 0 : index
    %14 = vector.load %arg9[%c0_8, %c0_9] : memref<1x8xf32, #tpu.memory_space<vmem>>, vector<1x8xf32>
    %15 = vector.broadcast %14 : vector<1x8xf32> to vector<8x8xf32>
    %16 = arith.addf %13, %15 : vector<8x8xf32>
    %17 = math.exp %16 : vector<8x8xf32>
    %c0_10 = arith.constant 0 : index
    %c0_11 = arith.constant 0 : index
    %18 = vector.load %arg3[%c0_10, %c0_11] : memref<8x1xf32, #tpu.memory_space<vmem>>, vector<8x1xf32>
    %c0_12 = arith.constant 0 : index
    %c0_13 = arith.constant 0 : index
    %19 = vector.load %arg4[%c0_12, %c0_13] : memref<8x1xf32, #tpu.memory_space<vmem>>, vector<8x1xf32>
    %20 = arith.mulf %18, %19 : vector<8x1xf32>
    %c0_14 = arith.constant 0 : index
    %c0_15 = arith.constant 0 : index
    %21 = vector.load %arg10[%c0_14, %c0_15] : memref<1x8xf32, #tpu.memory_space<vmem>>, vector<1x8xf32>
    %22 = vector.broadcast %20 : vector<8x1xf32> to vector<8x8xf32>
    %23 = vector.broadcast %21 : vector<1x8xf32> to vector<8x8xf32>
    %24 = arith.mulf %22, %23 : vector<8x8xf32>
    %c0_16 = arith.constant 0 : index
    %c0_17 = arith.constant 0 : index
    %25 = vector.load %arg12[%c0_16, %c0_17] : memref<1x8xf32, #tpu.memory_space<vmem>>, vector<1x8xf32>
    %26 = vector.broadcast %25 : vector<1x8xf32> to vector<8x8xf32>
    %27 = arith.addf %24, %26 : vector<8x8xf32>
    %c0_18 = arith.constant 0 : index
    %c0_19 = arith.constant 0 : index
    %28 = vector.load %arg5[%c0_18, %c0_19] : memref<8x4xf32, #tpu.memory_space<vmem>>, vector<8x4xf32>
    %c0_20 = arith.constant 0 : index
    %c0_21 = arith.constant 0 : index
    %29 = vector.load %arg6[%c0_20, %c0_21] : memref<8x4xf32, #tpu.memory_space<vmem>>, vector<8x4xf32>
    %30 = arith.addf %28, %29 : vector<8x4xf32>
    %c0_22 = arith.constant 0 : index
    %c0_23 = arith.constant 0 : index
    %31 = vector.load %arg11[%c0_22, %c0_23] : memref<4x8xf32, #tpu.memory_space<vmem>>, vector<4x8xf32>
    %cst_24 = arith.constant dense<0.000000e+00> : vector<8x8xf32>
    %32 = tpu.matmul %30, %31, %cst_24 {dimension_numbers = #tpu.dot_dimension_numbers<[1], [0], [0], [1], [0, 0, 1, 1], [], []>} : vector<8x4xf32>, vector<4x8xf32>, vector<8x8xf32> -> vector<8x8xf32>
    %33 = arith.addf %27, %32 : vector<8x8xf32>
    %34 = arith.mulf %17, %33 : vector<8x8xf32>
    %cst_25 = arith.constant dense<0.000000e+00> : vector<8xf32>
    %35 = vector.multi_reduction <add>, %34, %cst_25 [1] : vector<8x8xf32> to vector<8xf32>
    %36 = vector.shape_cast %35 : vector<8xf32> to vector<1x8xf32>
    %c0_26 = arith.constant 0 : index
    %c0_27 = arith.constant 0 : index
    %37 = vector.load %arg13[%c0_26, %c0_27] : memref<1x8xf32, #tpu.memory_space<vmem>>, vector<1x8xf32>
    tpu.vector_store %arg13[%c0_26, %c0_27], %36 {strides = array<i32>} : memref<1x8xf32, #tpu.memory_space<vmem>>, vector<1x8xf32>,
    return
  }
  func.func @transform_0(%arg0: i32) -> (i32, i32) {
    %c0_i32 = arith.constant 0 : i32
    %c0_i32_0 = arith.constant 0 : i32
    return %arg0, %c0_i32 : i32, i32
  }
  func.func @transform_1(%arg0: i32) -> (i32, i32) {
    %c0_i32 = arith.constant 0 : i32
    %c0_i32_0 = arith.constant 0 : i32
    return %arg0, %c0_i32 : i32, i32
  }
  func.func @transform_2(%arg0: i32) -> (i32, i32) {
    %c0_i32 = arith.constant 0 : i32
    %c0_i32_0 = arith.constant 0 : i32
    return %arg0, %c0_i32 : i32, i32
  }
  func.func @transform_3(%arg0: i32) -> (i32, i32) {
    %c0_i32 = arith.constant 0 : i32
    %c0_i32_0 = arith.constant 0 : i32
    return %arg0, %c0_i32 : i32, i32
  }
  func.func @transform_4(%arg0: i32) -> (i32, i32) {
    %c0_i32 = arith.constant 0 : i32
    %c0_i32_0 = arith.constant 0 : i32
    return %arg0, %c0_i32 : i32, i32
  }
  func.func @transform_5(%arg0: i32) -> (i32, i32) {
    %c0_i32 = arith.constant 0 : i32
    %c0_i32_0 = arith.constant 0 : i32
    return %arg0, %c0_i32 : i32, i32
  }
  func.func @transform_6(%arg0: i32) -> (i32, i32) {
    %c0_i32 = arith.constant 0 : i32
    %c0_i32_0 = arith.constant 0 : i32
    %c0_i32_1 = arith.constant 0 : i32
    return %c0_i32, %c0_i32_0 : i32, i32
  }
  func.func @transform_7(%arg0: i32) -> (i32, i32) {
    %c0_i32 = arith.constant 0 : i32
    %c0_i32_0 = arith.constant 0 : i32
    %c0_i32_1 = arith.constant 0 : i32
    return %c0_i32, %c0_i32_0 : i32, i32
  }
  func.func @transform_8(%arg0: i32) -> (i32, i32) {
    %c0_i32 = arith.constant 0 : i32
    %c0_i32_0 = arith.constant 0 : i32
    %c0_i32_1 = arith.constant 0 : i32
    return %c0_i32, %c0_i32_0 : i32, i32
  }
  func.func @transform_9(%arg0: i32) -> (i32, i32) {
    %c0_i32 = arith.constant 0 : i32
    %c0_i32_0 = arith.constant 0 : i32
    %c0_i32_1 = arith.constant 0 : i32
    return %c0_i32, %c0_i32_0 : i32, i32
  }
  func.func @transform_10(%arg0: i32) -> (i32, i32) {
    %c0_i32 = arith.constant 0 : i32
    %c0_i32_0 = arith.constant 0 : i32
    %c0_i32_1 = arith.constant 0 : i32
    return %c0_i32, %c0_i32_0 : i32, i32
  }
  func.func @transform_11(%arg0: i32) -> (i32, i32) {
    %c0_i32 = arith.constant 0 : i32
    %c0_i32_0 = arith.constant 0 : i32
    %c0_i32_1 = arith.constant 0 : i32
    return %c0_i32, %c0_i32_0 : i32, i32
  }
  func.func @transform_12(%arg0: i32) -> (i32, i32) {
    %c0_i32 = arith.constant 0 : i32
    %c0_i32_0 = arith.constant 0 : i32
    return %c0_i32, %arg0 : i32, i32
  }
}

</mosaic_0001>

<llo_original>
// kernel: two_body_forward.1
$region0: #{two_body_forward.1}
  #allocation0 [shape = 'u32[]', space=smem, size = 0x4, offset = 0x4, fixed_abs, tag = 'smem constant byte address 0x4 - core index']
  #allocation1 [shape = 'u32[72,128]{1,0:T(1,128)}', space=vmem, size = 0x9000, scoped, tag = 'internal scratch']
  %s0 = inlined_call_operand.vmem [shape: f32[8,32], index: 0, kind: input, shape index: {}]
  %s1 = inlined_call_operand.vmem [shape: f32[8,32], index: 1, kind: input, shape index: {}]
  %s2 = inlined_call_operand.vmem [shape: f32[8,1], index: 2, kind: input, shape index: {}]
  %s3 = inlined_call_operand.vmem [shape: f32[8,1], index: 3, kind: input, shape index: {}]
  %s4 = inlined_call_operand.vmem [shape: f32[8,4], index: 4, kind: input, shape index: {}]
  %s5 = inlined_call_operand.vmem [shape: f32[8,4], index: 5, kind: input, shape index: {}]
  %s6 = inlined_call_operand.vmem [shape: f32[1024,8], index: 6, kind: input, shape index: {}]
  %s7 = inlined_call_operand.vmem [shape: f32[32,8], index: 7, kind: input, shape index: {}]
  %s8 = inlined_call_operand.vmem [shape: f32[1,8], index: 8, kind: input, shape index: {}]
  %s9 = inlined_call_operand.vmem [shape: f32[1,8], index: 9, kind: input, shape index: {}]
  %s10 = inlined_call_operand.vmem [shape: f32[4,8], index: 10, kind: input, shape index: {}]
  %s11 = inlined_call_operand.vmem [shape: f32[1,8], index: 11, kind: input, shape index: {}]
  %s12 = inlined_call_operand.hbm [shape: f32[1,8], index: 12, kind: output, shape index: {}]
  %s13 = sld [smem:[#allocation0]]
  $region58: #{two_body_forward.1} parent=0
    _
  %s15 = ssub.s32 1, %s13
  %s16 = scalar_select 0, %s15, %s13
  $region1: #{two_body_forward.1} parent=0
    #allocation2 [shape = 'u8[512]{0}', space=vmem, size = 0x400, scoped, tag = 'output window, operand 0, single buffered']
    #allocation3 [shape = 's32[1]{0}', space=sflag, size = 0x4, scoped, tag = 'scoped memory for two_body_forward.1']
    %17 = vsyncpa [#allocation3], 0
    // Predicated region
    $region2: #{two_body_forward.1} parent=1 // pred_check
      _
    $region3: #{two_body_forward.1} parent=1 // pred_check_branch
      %19 = sbr.rel (0) target = $region5
    $region4: #{two_body_forward.1} parent=1 // pred_region
      _
    $region5: #{two_body_forward.1} parent=1 // pred_fallthru
      _
    // Predicated region
    $region6: #{two_body_forward.1} parent=1 // pred_check
      _
    $region7: #{two_body_forward.1} parent=1 // pred_check_branch
      %21 = sbr.rel (0) target = $region9
    $region8: #{two_body_forward.1} parent=1 // pred_region
      _
    $region9: #{two_body_forward.1} parent=1 // pred_fallthru
      _
    // Predicated region
    $region10: #{two_body_forward.1} parent=1 // pred_check
      _
    $region11: #{two_body_forward.1} parent=1 // pred_check_branch
      %23 = sbr.rel (0) target = $region13
    $region12: #{two_body_forward.1} parent=1 // pred_region
      _
    $region13: #{two_body_forward.1} parent=1 // pred_fallthru
      _
    // Predicated region
    $region14: #{two_body_forward.1} parent=1 // pred_check
      _
    $region15: #{two_body_forward.1} parent=1 // pred_check_branch
      %25 = sbr.rel (0) target = $region17
    $region16: #{two_body_forward.1} parent=1 // pred_region
      _
    $region17: #{two_body_forward.1} parent=1 // pred_fallthru
      _
    // Predicated region
    $region18: #{two_body_forward.1} parent=1 // pred_check
      _
    $region19: #{two_body_forward.1} parent=1 // pred_check_branch
      %27 = sbr.rel (0) target = $region21
    $region20: #{two_body_forward.1} parent=1 // pred_region
      _
    $region21: #{two_body_forward.1} parent=1 // pred_fallthru
      _
    // Predicated region
    $region22: #{two_body_forward.1} parent=1 // pred_check
      _
    $region23: #{two_body_forward.1} parent=1 // pred_check_branch
      %29 = sbr.rel (0) target = $region25
    $region24: #{two_body_forward.1} parent=1 // pred_region
      _
    $region25: #{two_body_forward.1} parent=1 // pred_fallthru
      _
    // Predicated region
    $region26: #{two_body_forward.1} parent=1 // pred_check
      _
    $region27: #{two_body_forward.1} parent=1 // pred_check_branch
      %31 = sbr.rel (0) target = $region29
    $region28: #{two_body_forward.1} parent=1 // pred_region
      _
    $region29: #{two_body_forward.1} parent=1 // pred_fallthru
      _
    // Predicated region
    $region30: #{two_body_forward.1} parent=1 // pred_check
      _
    $region31: #{two_body_forward.1} parent=1 // pred_check_branch
      %33 = sbr.rel (0) target = $region33
    $region32: #{two_body_forward.1} parent=1 // pred_region
      _
    $region33: #{two_body_forward.1} parent=1 // pred_fallthru
      _
    // Predicated region
    $region34: #{two_body_forward.1} parent=1 // pred_check
      _
    $region35: #{two_body_forward.1} parent=1 // pred_check_branch
      %35 = sbr.rel (0) target = $region37
    $region36: #{two_body_forward.1} parent=1 // pred_region
      _
    $region37: #{two_body_forward.1} parent=1 // pred_fallthru
      _
    // Predicated region
    $region38: #{two_body_forward.1} parent=1 // pred_check
      _
    $region39: #{two_body_forward.1} parent=1 // pred_check_branch
      %37 = sbr.rel (0) target = $region41
    $region40: #{two_body_forward.1} parent=1 // pred_region
      _
    $region41: #{two_body_forward.1} parent=1 // pred_fallthru
      _
    // Predicated region
    $region42: #{two_body_forward.1} parent=1 // pred_check
      _
    $region43: #{two_body_forward.1} parent=1 // pred_check_branch
      %39 = sbr.rel (0) target = $region45
    $region44: #{two_body_forward.1} parent=1 // pred_region
      _
    $region45: #{two_body_forward.1} parent=1 // pred_fallthru
      _
    // Predicated region
    $region46: #{two_body_forward.1} parent=1 // pred_check
      _
    $region47: #{two_body_forward.1} parent=1 // pred_check_branch
      %41 = sbr.rel (0) target = $region49
    $region48: #{two_body_forward.1} parent=1 // pred_region
      _
    $region49: #{two_body_forward.1} parent=1 // pred_fallthru
      _
    %v42 = vld [vmem:[%s0] sm:$0xff]
    %v43 = vld [vmem:[%s1] sm:$0xff]
    %v44 = vperm.slane %v42, 0
    %v45 = vlaneseq
    %v46 = vshrl.u32 %v45, 7
    %48 = vset.pattern.permute.xlu0 %v46
    %49 = vperm.xlu0 %48, %v44
    %v50 = vpop.permute.xlu0 %49
    %v51 = vlaneseq
    %v52 = vshrl.u32 %v51, 7
    %v53 = vadd.s32 %v52, 8
    %54 = vset.pattern.permute.xlu0 %v53
    %55 = vperm.xlu0 %54, %v44
    %v56 = vpop.permute.xlu0 %55
    %v57 = vlaneseq
    %v58 = vshrl.u32 %v57, 7
    %v59 = vadd.s32 %v58, 16
    %60 = vset.pattern.permute.xlu0 %v59
    %61 = vperm.xlu0 %60, %v44
    %v62 = vpop.permute.xlu0 %61
    %v63 = vlaneseq
    %v64 = vshrl.u32 %v63, 7
    %v65 = vadd.s32 %v64, 24
    %66 = vset.pattern.permute.xlu0 %v65
    %67 = vperm.xlu0 %66, %v44
    %v68 = vpop.permute.xlu0 %67
    %v69 = vperm.slane %v42, 1
    %v70 = vlaneseq
    %v71 = vshrl.u32 %v70, 7
    %73 = vset.pattern.permute.xlu0 %v71
    %74 = vperm.xlu0 %73, %v69
    %v75 = vpop.permute.xlu0 %74
    %v76 = vlaneseq
    %v77 = vshrl.u32 %v76, 7
    %v78 = vadd.s32 %v77, 8
    %79 = vset.pattern.permute.xlu0 %v78
    %80 = vperm.xlu0 %79, %v69
    %v81 = vpop.permute.xlu0 %80
    %v82 = vlaneseq
    %v83 = vshrl.u32 %v82, 7
    %v84 = vadd.s32 %v83, 16
    %85 = vset.pattern.permute.xlu0 %v84
    %86 = vperm.xlu0 %85, %v69
    %v87 = vpop.permute.xlu0 %86
    %v88 = vlaneseq
    %v89 = vshrl.u32 %v88, 7
    %v90 = vadd.s32 %v89, 24
    %91 = vset.pattern.permute.xlu0 %v90
    %92 = vperm.xlu0 %91, %v69
    %v93 = vpop.permute.xlu0 %92
    %v94 = vperm.slane %v42, 2
    %v95 = vlaneseq
    %v96 = vshrl.u32 %v95, 7
    %98 = vset.pattern.permute.xlu0 %v96
    %99 = vperm.xlu0 %98, %v94
    %v100 = vpop.permute.xlu0 %99
    %v101 = vlaneseq
    %v102 = vshrl.u32 %v101, 7
    %v103 = vadd.s32 %v102, 8
    %104 = vset.pattern.permute.xlu0 %v103
    %105 = vperm.xlu0 %104, %v94
    %v106 = vpop.permute.xlu0 %105
    %v107 = vlaneseq
    %v108 = vshrl.u32 %v107, 7
    %v109 = vadd.s32 %v108, 16
    %110 = vset.pattern.permute.xlu0 %v109
    %111 = vperm.xlu0 %110, %v94
    %v112 = vpop.permute.xlu0 %111
    %v113 = vlaneseq
    %v114 = vshrl.u32 %v113, 7
    %v115 = vadd.s32 %v114, 24
    %116 = vset.pattern.permute.xlu0 %v115
    %117 = vperm.xlu0 %116, %v94
    %v118 = vpop.permute.xlu0 %117
    %v119 = vperm.slane %v42, 3
    %v120 = vlaneseq
    %v121 = vshrl.u32 %v120, 7
    %123 = vset.pattern.permute.xlu0 %v121
    %124 = vperm.xlu0 %123, %v119
    %v125 = vpop.permute.xlu0 %124
    %v126 = vlaneseq
    %v127 = vshrl.u32 %v126, 7
    %v128 = vadd.s32 %v127, 8
    %129 = vset.pattern.permute.xlu0 %v128
    %130 = vperm.xlu0 %129, %v119
    %v131 = vpop.permute.xlu0 %130
    %v132 = vlaneseq
    %v133 = vshrl.u32 %v132, 7
    %v134 = vadd.s32 %v133, 16
    %135 = vset.pattern.permute.xlu0 %v134
    %136 = vperm.xlu0 %135, %v119
    %v137 = vpop.permute.xlu0 %136
    %v138 = vlaneseq
    %v139 = vshrl.u32 %v138, 7
    %v140 = vadd.s32 %v139, 24
    %141 = vset.pattern.permute.xlu0 %v140
    %142 = vperm.xlu0 %141, %v119
    %v143 = vpop.permute.xlu0 %142
    %v144 = vperm.slane %v42, 4
    %v145 = vlaneseq
    %v146 = vshrl.u32 %v145, 7
    %148 = vset.pattern.permute.xlu0 %v146
    %149 = vperm.xlu0 %148, %v144
    %v150 = vpop.permute.xlu0 %149
    %v151 = vlaneseq
    %v152 = vshrl.u32 %v151, 7
    %v153 = vadd.s32 %v152, 8
    %154 = vset.pattern.permute.xlu0 %v153
    %155 = vperm.xlu0 %154, %v144
    %v156 = vpop.permute.xlu0 %155
    %v157 = vlaneseq
    %v158 = vshrl.u32 %v157, 7
    %v159 = vadd.s32 %v158, 16
    %160 = vset.pattern.permute.xlu0 %v159
    %161 = vperm.xlu0 %160, %v144
    %v162 = vpop.permute.xlu0 %161
    %v163 = vlaneseq
    %v164 = vshrl.u32 %v163, 7
    %v165 = vadd.s32 %v164, 24
    %166 = vset.pattern.permute.xlu0 %v165
    %167 = vperm.xlu0 %166, %v144
    %v168 = vpop.permute.xlu0 %167
    %v169 = vperm.slane %v42, 5
    %v170 = vlaneseq
    %v171 = vshrl.u32 %v170, 7
    %173 = vset.pattern.permute.xlu0 %v171
    %174 = vperm.xlu0 %173, %v169
    %v175 = vpop.permute.xlu0 %174
    %v176 = vlaneseq
    %v177 = vshrl.u32 %v176, 7
    %v178 = vadd.s32 %v177, 8
    %179 = vset.pattern.permute.xlu0 %v178
    %180 = vperm.xlu0 %179, %v169
    %v181 = vpop.permute.xlu0 %180
    %v182 = vlaneseq
    %v183 = vshrl.u32 %v182, 7
    %v184 = vadd.s32 %v183, 16
    %185 = vset.pattern.permute.xlu0 %v184
    %186 = vperm.xlu0 %185, %v169
    %v187 = vpop.permute.xlu0 %186
    %v188 = vlaneseq
    %v189 = vshrl.u32 %v188, 7
    %v190 = vadd.s32 %v189, 24
    %191 = vset.pattern.permute.xlu0 %v190
    %192 = vperm.xlu0 %191, %v169
    %v193 = vpop.permute.xlu0 %192
    %v194 = vperm.slane %v42, 6
    %v195 = vlaneseq
    %v196 = vshrl.u32 %v195, 7
    %198 = vset.pattern.permute.xlu0 %v196
    %199 = vperm.xlu0 %198, %v194
    %v200 = vpop.permute.xlu0 %199
    %v201 = vlaneseq
    %v202 = vshrl.u32 %v201, 7
    %v203 = vadd.s32 %v202, 8
    %204 = vset.pattern.permute.xlu0 %v203
    %205 = vperm.xlu0 %204, %v194
    %v206 = vpop.permute.xlu0 %205
    %v207 = vlaneseq
    %v208 = vshrl.u32 %v207, 7
    %v209 = vadd.s32 %v208, 16
    %210 = vset.pattern.permute.xlu0 %v209
    %211 = vperm.xlu0 %210, %v194
    %v212 = vpop.permute.xlu0 %211
    %v213 = vlaneseq
    %v214 = vshrl.u32 %v213, 7
    %v215 = vadd.s32 %v214, 24
    %216 = vset.pattern.permute.xlu0 %v215
    %217 = vperm.xlu0 %216, %v194
    %v218 = vpop.permute.xlu0 %217
    %v219 = vperm.slane %v42, 7
    %v220 = vlaneseq
    %v221 = vshrl.u32 %v220, 7
    %223 = vset.pattern.permute.xlu0 %v221
    %224 = vperm.xlu0 %223, %v219
    %v225 = vpop.permute.xlu0 %224
    %v226 = vlaneseq
    %v227 = vshrl.u32 %v226, 7
    %v228 = vadd.s32 %v227, 8
    %229 = vset.pattern.permute.xlu0 %v228
    %230 = vperm.xlu0 %229, %v219
    %v231 = vpop.permute.xlu0 %230
    %v232 = vlaneseq
    %v233 = vshrl.u32 %v232, 7
    %v234 = vadd.s32 %v233, 16
    %235 = vset.pattern.permute.xlu0 %v234
    %236 = vperm.xlu0 %235, %v219
    %v237 = vpop.permute.xlu0 %236
    %v238 = vlaneseq
    %v239 = vshrl.u32 %v238, 7
    %v240 = vadd.s32 %v239, 24
    %241 = vset.pattern.permute.xlu0 %v240
    %242 = vperm.xlu0 %241, %v219
    %v243 = vpop.permute.xlu0 %242
    %v245 = vrot.slane %v43, 1
    %v246 = vrot.slane %v43, 2
    %v247 = vrot.slane %v43, 3
    %v248 = vrot.slane %v43, 4
    %v249 = vrot.slane %v43, 5
    %v250 = vrot.slane %v43, 6
    %v251 = vrot.slane %v43, 7
    %v252 = vperm.slane %v43, 0
    %v253 = vperm.slane %v245, 0
    %v254 = vperm.slane %v246, 0
    %v255 = vperm.slane %v247, 0
    %v256 = vperm.slane %v248, 0
    %v257 = vperm.slane %v249, 0
    %v258 = vperm.slane %v250, 0
    %v259 = vperm.slane %v251, 0
    %v268 = vmul.f32 %v50, %v252
    %v269 = vmul.f32 %v56, %v252
    %v270 = vmul.f32 %v62, %v252
    %v271 = vmul.f32 %v68, %v252
    %v272 = vmul.f32 %v75, %v253
    %v273 = vmul.f32 %v81, %v253
    %v274 = vmul.f32 %v87, %v253
    %v275 = vmul.f32 %v93, %v253
    %v276 = vmul.f32 %v100, %v254
    %v277 = vmul.f32 %v106, %v254
    %v278 = vmul.f32 %v112, %v254
    %v279 = vmul.f32 %v118, %v254
    %v280 = vmul.f32 %v125, %v255
    %v281 = vmul.f32 %v131, %v255
    %v282 = vmul.f32 %v137, %v255
    %v283 = vmul.f32 %v143, %v255
    %v284 = vmul.f32 %v150, %v256
    %v285 = vmul.f32 %v156, %v256
    %v286 = vmul.f32 %v162, %v256
    %v287 = vmul.f32 %v168, %v256
    %v288 = vmul.f32 %v175, %v257
    %v289 = vmul.f32 %v181, %v257
    %v290 = vmul.f32 %v187, %v257
    %v291 = vmul.f32 %v193, %v257
    %v292 = vmul.f32 %v200, %v258
    %v293 = vmul.f32 %v206, %v258
    %v294 = vmul.f32 %v212, %v258
    %v295 = vmul.f32 %v218, %v258
    %v296 = vmul.f32 %v225, %v259
    %v297 = vmul.f32 %v231, %v259
    %v298 = vmul.f32 %v237, %v259
    %v299 = vmul.f32 %v243, %v259
    %v300 = vrot.slane %v276, 4
    %vm301 = vcmask 1047556
    %v302 = vsel %vm301, %v300, %v268
    %v303 = vrot.slane %v268, 4
    %v304 = vsel %vm301, %v276, %v303
    %v306 = vunpack.c.l.s4 1983009808
    %v307 = vunpack.c.0.s8 %v306
    %v308 = vperm.slane %v302, %v307
    %v310 = vunpack.c.l.s4 1983009808
    %v311 = vunpack.c.0.s8 %v310
    %v312 = vperm.slane %v304, %v311
    %v313 = vrot.slane %v280, 4
    %v314 = vsel %vm301, %v313, %v272
    %v315 = vrot.slane %v272, 4
    %v316 = vsel %vm301, %v280, %v315
    %v318 = vunpack.c.l.s4 1983009808
    %v319 = vunpack.c.0.s8 %v318
    %v320 = vperm.slane %v314, %v319
    %v322 = vunpack.c.l.s4 1983009808
    %v323 = vunpack.c.0.s8 %v322
    %v324 = vperm.slane %v316, %v323
    %v325 = vrot.slane %v292, 4
    %v326 = vsel %vm301, %v325, %v284
    %v327 = vrot.slane %v284, 4
    %v328 = vsel %vm301, %v292, %v327
    %v330 = vunpack.c.l.s4 1983009808
    %v331 = vunpack.c.0.s8 %v330
    %v332 = vperm.slane %v326, %v331
    %v334 = vunpack.c.l.s4 1983009808
    %v335 = vunpack.c.0.s8 %v334
    %v336 = vperm.slane %v328, %v335
    %v337 = vrot.slane %v296, 4
    %v338 = vsel %vm301, %v337, %v288
    %v339 = vrot.slane %v288, 4
    %v340 = vsel %vm301, %v296, %v339
    %v342 = vunpack.c.l.s4 1983009808
    %v343 = vunpack.c.0.s8 %v342
    %v344 = vperm.slane %v338, %v343
    %v346 = vunpack.c.l.s4 1983009808
    %v347 = vunpack.c.0.s8 %v346
    %v348 = vperm.slane %v340, %v347
    %v349 = vrot.slane %v320, 4
    %v350 = vsel %vm301, %v349, %v308
    %v351 = vrot.slane %v308, 4
    %v352 = vsel %vm301, %v320, %v351
    %v354 = vunpack.c.l.s4 1934713408
    %v355 = vunpack.c.0.s8 %v354
    %v356 = vperm.slane %v350, %v355
    %v358 = vunpack.c.l.s4 1934713408
    %v359 = vunpack.c.0.s8 %v358
    %v360 = vperm.slane %v352, %v359
    %v361 = vrot.slane %v324, 4
    %v362 = vsel %vm301, %v361, %v312
    %v363 = vrot.slane %v312, 4
    %v364 = vsel %vm301, %v324, %v363
    %v366 = vunpack.c.l.s4 1934713408
    %v367 = vunpack.c.0.s8 %v366
    %v368 = vperm.slane %v362, %v367
    %v370 = vunpack.c.l.s4 1934713408
    %v371 = vunpack.c.0.s8 %v370
    %v372 = vperm.slane %v364, %v371
    %v373 = vrot.slane %v344, 4
    %v374 = vsel %vm301, %v373, %v332
    %v375 = vrot.slane %v332, 4
    %v376 = vsel %vm301, %v344, %v375
    %v378 = vunpack.c.l.s4 1934713408
    %v379 = vunpack.c.0.s8 %v378
    %v380 = vperm.slane %v374, %v379
    %v382 = vunpack.c.l.s4 1934713408
    %v383 = vunpack.c.0.s8 %v382
    %v384 = vperm.slane %v376, %v383
    %v385 = vrot.slane %v348, 4
    %v386 = vsel %vm301, %v385, %v336
    %v387 = vrot.slane %v336, 4
    %v388 = vsel %vm301, %v348, %v387
    %v390 = vunpack.c.l.s4 1934713408
    %v391 = vunpack.c.0.s8 %v390
    %v392 = vperm.slane %v386, %v391
    %v394 = vunpack.c.l.s4 1934713408
    %v395 = vunpack.c.0.s8 %v394
    %v396 = vperm.slane %v388, %v395
    %v397 = vrot.slane %v380, 4
    %v398 = vsel %vm301, %v397, %v356
    %v399 = vrot.slane %v356, 4
    %v400 = vsel %vm301, %v380, %v399
    %v401 = vrot.slane %v384, 4
    %v402 = vsel %vm301, %v401, %v360
    %v403 = vrot.slane %v360, 4
    %v404 = vsel %vm301, %v384, %v403
    %v405 = vrot.slane %v392, 4
    %v406 = vsel %vm301, %v405, %v368
    %v407 = vrot.slane %v368, 4
    %v408 = vsel %vm301, %v392, %v407
    %v409 = vrot.slane %v396, 4
    %v410 = vsel %vm301, %v409, %v372
    %v411 = vrot.slane %v372, 4
    %v412 = vsel %vm301, %v396, %v411
    %v413 = vrot.slane %v277, 4
    %v414 = vsel %vm301, %v413, %v269
    %v415 = vrot.slane %v269, 4
    %v416 = vsel %vm301, %v277, %v415
    %v418 = vunpack.c.l.s4 1983009808
    %v419 = vunpack.c.0.s8 %v418
    %v420 = vperm.slane %v414, %v419
    %v422 = vunpack.c.l.s4 1983009808
    %v423 = vunpack.c.0.s8 %v422
    %v424 = vperm.slane %v416, %v423
    %v425 = vrot.slane %v281, 4
    %v426 = vsel %vm301, %v425, %v273
    %v427 = vrot.slane %v273, 4
    %v428 = vsel %vm301, %v281, %v427
    %v430 = vunpack.c.l.s4 1983009808
    %v431 = vunpack.c.0.s8 %v430
    %v432 = vperm.slane %v426, %v431
    %v434 = vunpack.c.l.s4 1983009808
    %v435 = vunpack.c.0.s8 %v434
    %v436 = vperm.slane %v428, %v435
    %v437 = vrot.slane %v293, 4
    %v438 = vsel %vm301, %v437, %v285
    %v439 = vrot.slane %v285, 4
    %v440 = vsel %vm301, %v293, %v439
    %v442 = vunpack.c.l.s4 1983009808
    %v443 = vunpack.c.0.s8 %v442
    %v444 = vperm.slane %v438, %v443
    %v446 = vunpack.c.l.s4 1983009808
    %v447 = vunpack.c.0.s8 %v446
    %v448 = vperm.slane %v440, %v447
    %v449 = vrot.slane %v297, 4
    %v450 = vsel %vm301, %v449, %v289
    %v451 = vrot.slane %v289, 4
    %v452 = vsel %vm301, %v297, %v451
    %v454 = vunpack.c.l.s4 1983009808
    %v455 = vunpack.c.0.s8 %v454
    %v456 = vperm.slane %v450, %v455
    %v458 = vunpack.c.l.s4 1983009808
    %v459 = vunpack.c.0.s8 %v458
    %v460 = vperm.slane %v452, %v459
    %v461 = vrot.slane %v432, 4
    %v462 = vsel %vm301, %v461, %v420
    %v463 = vrot.slane %v420, 4
    %v464 = vsel %vm301, %v432, %v463
    %v466 = vunpack.c.l.s4 1934713408
    %v467 = vunpack.c.0.s8 %v466
    %v468 = vperm.slane %v462, %v467
    %v470 = vunpack.c.l.s4 1934713408
    %v471 = vunpack.c.0.s8 %v470
    %v472 = vperm.slane %v464, %v471
    %v473 = vrot.slane %v436, 4
    %v474 = vsel %vm301, %v473, %v424
    %v475 = vrot.slane %v424, 4
    %v476 = vsel %vm301, %v436, %v475
    %v478 = vunpack.c.l.s4 1934713408
    %v479 = vunpack.c.0.s8 %v478
    %v480 = vperm.slane %v474, %v479
    %v482 = vunpack.c.l.s4 1934713408
    %v483 = vunpack.c.0.s8 %v482
    %v484 = vperm.slane %v476, %v483
    %v485 = vrot.slane %v456, 4
    %v486 = vsel %vm301, %v485, %v444
    %v487 = vrot.slane %v444, 4
    %v488 = vsel %vm301, %v456, %v487
    %v490 = vunpack.c.l.s4 1934713408
    %v491 = vunpack.c.0.s8 %v490
    %v492 = vperm.slane %v486, %v491
    %v494 = vunpack.c.l.s4 1934713408
    %v495 = vunpack.c.0.s8 %v494
    %v496 = vperm.slane %v488, %v495
    %v497 = vrot.slane %v460, 4
    %v498 = vsel %vm301, %v497, %v448
    %v499 = vrot.slane %v448, 4
    %v500 = vsel %vm301, %v460, %v499
    %v502 = vunpack.c.l.s4 1934713408
    %v503 = vunpack.c.0.s8 %v502
    %v504 = vperm.slane %v498, %v503
    %v506 = vunpack.c.l.s4 1934713408
    %v507 = vunpack.c.0.s8 %v506
    %v508 = vperm.slane %v500, %v507
    %v509 = vrot.slane %v492, 4
    %v510 = vsel %vm301, %v509, %v468
    %v511 = vrot.slane %v468, 4
    %v512 = vsel %vm301, %v492, %v511
    %v513 = vrot.slane %v496, 4
    %v514 = vsel %vm301, %v513, %v472
    %v515 = vrot.slane %v472, 4
    %v516 = vsel %vm301, %v496, %v515
    %v517 = vrot.slane %v504, 4
    %v518 = vsel %vm301, %v517, %v480
    %v519 = vrot.slane %v480, 4
    %v520 = vsel %vm301, %v504, %v519
    %v521 = vrot.slane %v508, 4
    %v522 = vsel %vm301, %v521, %v484
    %v523 = vrot.slane %v484, 4
    %v524 = vsel %vm301, %v508, %v523
    %v525 = vrot.slane %v278, 4
    %v526 = vsel %vm301, %v525, %v270
    %v527 = vrot.slane %v270, 4
    %v528 = vsel %vm301, %v278, %v527
    %v530 = vunpack.c.l.s4 1983009808
    %v531 = vunpack.c.0.s8 %v530
    %v532 = vperm.slane %v526, %v531
    %v534 = vunpack.c.l.s4 1983009808
    %v535 = vunpack.c.0.s8 %v534
    %v536 = vperm.slane %v528, %v535
    %v537 = vrot.slane %v282, 4
    %v538 = vsel %vm301, %v537, %v274
    %v539 = vrot.slane %v274, 4
    %v540 = vsel %vm301, %v282, %v539
    %v542 = vunpack.c.l.s4 1983009808
    %v543 = vunpack.c.0.s8 %v542
    %v544 = vperm.slane %v538, %v543
    %v546 = vunpack.c.l.s4 1983009808
    %v547 = vunpack.c.0.s8 %v546
    %v548 = vperm.slane %v540, %v547
    %v549 = vrot.slane %v294, 4
    %v550 = vsel %vm301, %v549, %v286
    %v551 = vrot.slane %v286, 4
    %v552 = vsel %vm301, %v294, %v551
    %v554 = vunpack.c.l.s4 1983009808
    %v555 = vunpack.c.0.s8 %v554
    %v556 = vperm.slane %v550, %v555
    %v558 = vunpack.c.l.s4 1983009808
    %v559 = vunpack.c.0.s8 %v558
    %v560 = vperm.slane %v552, %v559
    %v561 = vrot.slane %v298, 4
    %v562 = vsel %vm301, %v561, %v290
    %v563 = vrot.slane %v290, 4
    %v564 = vsel %vm301, %v298, %v563
    %v566 = vunpack.c.l.s4 1983009808
    %v567 = vunpack.c.0.s8 %v566
    %v568 = vperm.slane %v562, %v567
    %v570 = vunpack.c.l.s4 1983009808
    %v571 = vunpack.c.0.s8 %v570
    %v572 = vperm.slane %v564, %v571
    %v573 = vrot.slane %v544, 4
    %v574 = vsel %vm301, %v573, %v532
    %v575 = vrot.slane %v532, 4
    %v576 = vsel %vm301, %v544, %v575
    %v578 = vunpack.c.l.s4 1934713408
    %v579 = vunpack.c.0.s8 %v578
    %v580 = vperm.slane %v574, %v579
    %v582 = vunpack.c.l.s4 1934713408
    %v583 = vunpack.c.0.s8 %v582
    %v584 = vperm.slane %v576, %v583
    %v585 = vrot.slane %v548, 4
    %v586 = vsel %vm301, %v585, %v536
    %v587 = vrot.slane %v536, 4
    %v588 = vsel %vm301, %v548, %v587
    %v590 = vunpack.c.l.s4 1934713408
    %v591 = vunpack.c.0.s8 %v590
    %v592 = vperm.slane %v586, %v591
    %v594 = vunpack.c.l.s4 1934713408
    %v595 = vunpack.c.0.s8 %v594
    %v596 = vperm.slane %v588, %v595
    %v597 = vrot.slane %v568, 4
    %v598 = vsel %vm301, %v597, %v556
    %v599 = vrot.slane %v556, 4
    %v600 = vsel %vm301, %v568, %v599
    %v602 = vunpack.c.l.s4 1934713408
    %v603 = vunpack.c.0.s8 %v602
    %v604 = vperm.slane %v598, %v603
    %v606 = vunpack.c.l.s4 1934713408
    %v607 = vunpack.c.0.s8 %v606
    %v608 = vperm.slane %v600, %v607
    %v609 = vrot.slane %v572, 4
    %v610 = vsel %vm301, %v609, %v560
    %v611 = vrot.slane %v560, 4
    %v612 = vsel %vm301, %v572, %v611
    %v614 = vunpack.c.l.s4 1934713408
    %v615 = vunpack.c.0.s8 %v614
    %v616 = vperm.slane %v610, %v615
    %v618 = vunpack.c.l.s4 1934713408
    %v619 = vunpack.c.0.s8 %v618
    %v620 = vperm.slane %v612, %v619
    %v621 = vrot.slane %v604, 4
    %v622 = vsel %vm301, %v621, %v580
    %v623 = vrot.slane %v580, 4
    %v624 = vsel %vm301, %v604, %v623
    %v625 = vrot.slane %v608, 4
    %v626 = vsel %vm301, %v625, %v584
    %v627 = vrot.slane %v584, 4
    %v628 = vsel %vm301, %v608, %v627
    %v629 = vrot.slane %v616, 4
    %v630 = vsel %vm301, %v629, %v592
    %v631 = vrot.slane %v592, 4
    %v632 = vsel %vm301, %v616, %v631
    %v633 = vrot.slane %v620, 4
    %v634 = vsel %vm301, %v633, %v596
    %v635 = vrot.slane %v596, 4
    %v636 = vsel %vm301, %v620, %v635
    %v637 = vrot.slane %v279, 4
    %v638 = vsel %vm301, %v637, %v271
    %v639 = vrot.slane %v271, 4
    %v640 = vsel %vm301, %v279, %v639
    %v642 = vunpack.c.l.s4 1983009808
    %v643 = vunpack.c.0.s8 %v642
    %v644 = vperm.slane %v638, %v643
    %v646 = vunpack.c.l.s4 1983009808
    %v647 = vunpack.c.0.s8 %v646
    %v648 = vperm.slane %v640, %v647
    %v649 = vrot.slane %v283, 4
    %v650 = vsel %vm301, %v649, %v275
    %v651 = vrot.slane %v275, 4
    %v652 = vsel %vm301, %v283, %v651
    %v654 = vunpack.c.l.s4 1983009808
    %v655 = vunpack.c.0.s8 %v654
    %v656 = vperm.slane %v650, %v655
    %v658 = vunpack.c.l.s4 1983009808
    %v659 = vunpack.c.0.s8 %v658
    %v660 = vperm.slane %v652, %v659
    %v661 = vrot.slane %v295, 4
    %v662 = vsel %vm301, %v661, %v287
    %v663 = vrot.slane %v287, 4
    %v664 = vsel %vm301, %v295, %v663
    %v666 = vunpack.c.l.s4 1983009808
    %v667 = vunpack.c.0.s8 %v666
    %v668 = vperm.slane %v662, %v667
    %v670 = vunpack.c.l.s4 1983009808
    %v671 = vunpack.c.0.s8 %v670
    %v672 = vperm.slane %v664, %v671
    %v673 = vrot.slane %v299, 4
    %v674 = vsel %vm301, %v673, %v291
    %v675 = vrot.slane %v291, 4
    %v676 = vsel %vm301, %v299, %v675
    %v678 = vunpack.c.l.s4 1983009808
    %v679 = vunpack.c.0.s8 %v678
    %v680 = vperm.slane %v674, %v679
    %v682 = vunpack.c.l.s4 1983009808
    %v683 = vunpack.c.0.s8 %v682
    %v684 = vperm.slane %v676, %v683
    %v685 = vrot.slane %v656, 4
    %v686 = vsel %vm301, %v685, %v644
    %v687 = vrot.slane %v644, 4
    %v688 = vsel %vm301, %v656, %v687
    %v690 = vunpack.c.l.s4 1934713408
    %v691 = vunpack.c.0.s8 %v690
    %v692 = vperm.slane %v686, %v691
    %v694 = vunpack.c.l.s4 1934713408
    %v695 = vunpack.c.0.s8 %v694
    %v696 = vperm.slane %v688, %v695
    %v697 = vrot.slane %v660, 4
    %v698 = vsel %vm301, %v697, %v648
    %v699 = vrot.slane %v648, 4
    %v700 = vsel %vm301, %v660, %v699
    %v702 = vunpack.c.l.s4 1934713408
    %v703 = vunpack.c.0.s8 %v702
    %v704 = vperm.slane %v698, %v703
    %v706 = vunpack.c.l.s4 1934713408
    %v707 = vunpack.c.0.s8 %v706
    %v708 = vperm.slane %v700, %v707
    %v709 = vrot.slane %v680, 4
    %v710 = vsel %vm301, %v709, %v668
    %v711 = vrot.slane %v668, 4
    %v712 = vsel %vm301, %v680, %v711
    %v714 = vunpack.c.l.s4 1934713408
    %v715 = vunpack.c.0.s8 %v714
    %v716 = vperm.slane %v710, %v715
    %v718 = vunpack.c.l.s4 1934713408
    %v719 = vunpack.c.0.s8 %v718
    %v720 = vperm.slane %v712, %v719
    %v721 = vrot.slane %v684, 4
    %v722 = vsel %vm301, %v721, %v672
    %v723 = vrot.slane %v672, 4
    %v724 = vsel %vm301, %v684, %v723
    %v726 = vunpack.c.l.s4 1934713408
    %v727 = vunpack.c.0.s8 %v726
    %v728 = vperm.slane %v722, %v727
    %v730 = vunpack.c.l.s4 1934713408
    %v731 = vunpack.c.0.s8 %v730
    %v732 = vperm.slane %v724, %v731
    %v733 = vrot.slane %v716, 4
    %v734 = vsel %vm301, %v733, %v692
    %v735 = vrot.slane %v692, 4
    %v736 = vsel %vm301, %v716, %v735
    %v737 = vrot.slane %v720, 4
    %v738 = vsel %vm301, %v737, %v696
    %v739 = vrot.slane %v696, 4
    %v740 = vsel %vm301, %v720, %v739
    %v741 = vrot.slane %v728, 4
    %v742 = vsel %vm301, %v741, %v704
    %v743 = vrot.slane %v704, 4
    %v744 = vsel %vm301, %v728, %v743
    %v745 = vrot.slane %v732, 4
    %v746 = vsel %vm301, %v745, %v708
    %v747 = vrot.slane %v708, 4
    %v748 = vsel %vm301, %v732, %v747
    %750 = vrot.lane.b32.xlu0 %v400, 32
    %v751 = vpop.permute.xlu0 %750
    %754 = vrot.lane.b32.xlu0 %v402, 64
    %v755 = vpop.permute.xlu0 %754
    %758 = vrot.lane.b32.xlu0 %v404, 96
    %v759 = vpop.permute.xlu0 %758
    %762 = vrot.lane.b32.xlu0 %v408, 32
    %v763 = vpop.permute.xlu0 %762
    %766 = vrot.lane.b32.xlu0 %v410, 64
    %v767 = vpop.permute.xlu0 %766
    %770 = vrot.lane.b32.xlu0 %v412, 96
    %v771 = vpop.permute.xlu0 %770
    %774 = vrot.lane.b32.xlu0 %v512, 32
    %v775 = vpop.permute.xlu0 %774
    %778 = vrot.lane.b32.xlu0 %v514, 64
    %v779 = vpop.permute.xlu0 %778
    %782 = vrot.lane.b32.xlu0 %v516, 96
    %v783 = vpop.permute.xlu0 %782
    %786 = vrot.lane.b32.xlu0 %v520, 32
    %v787 = vpop.permute.xlu0 %786
    %790 = vrot.lane.b32.xlu0 %v522, 64
    %v791 = vpop.permute.xlu0 %790
    %794 = vrot.lane.b32.xlu0 %v524, 96
    %v795 = vpop.permute.xlu0 %794
    %798 = vrot.lane.b32.xlu0 %v624, 32
    %v799 = vpop.permute.xlu0 %798
    %802 = vrot.lane.b32.xlu0 %v626, 64
    %v803 = vpop.permute.xlu0 %802
    %806 = vrot.lane.b32.xlu0 %v628, 96
    %v807 = vpop.permute.xlu0 %806
    %810 = vrot.lane.b32.xlu0 %v632, 32
    %v811 = vpop.permute.xlu0 %810
    %814 = vrot.lane.b32.xlu0 %v634, 64
    %v815 = vpop.permute.xlu0 %814
    %818 = vrot.lane.b32.xlu0 %v636, 96
    %v819 = vpop.permute.xlu0 %818
    %822 = vrot.lane.b32.xlu0 %v736, 32
    %v823 = vpop.permute.xlu0 %822
    %826 = vrot.lane.b32.xlu0 %v738, 64
    %v827 = vpop.permute.xlu0 %826
    %830 = vrot.lane.b32.xlu0 %v740, 96
    %v831 = vpop.permute.xlu0 %830
    %834 = vrot.lane.b32.xlu0 %v744, 32
    %v835 = vpop.permute.xlu0 %834
    %838 = vrot.lane.b32.xlu0 %v746, 64
    %v839 = vpop.permute.xlu0 %838
    %842 = vrot.lane.b32.xlu0 %v748, 96
    %v843 = vpop.permute.xlu0 %842
    %vm845 = vcmask 261120
    %v846 = vsel %vm845, %v398, %v751
    %vm847 = vcmask 523264
    %v848 = vsel %vm847, %v846, %v755
    %vm849 = vcmask 785408
    %v850 = vsel %vm849, %v848, %v759
    %v851 = vsel %vm845, %v406, %v763
    %v852 = vsel %vm847, %v851, %v767
    %v853 = vsel %vm849, %v852, %v771
    %v854 = vsel %vm845, %v510, %v775
    %v855 = vsel %vm847, %v854, %v779
    %v856 = vsel %vm849, %v855, %v783
    %v857 = vsel %vm845, %v518, %v787
    %v858 = vsel %vm847, %v857, %v791
    %v859 = vsel %vm849, %v858, %v795
    %v860 = vsel %vm845, %v622, %v799
    %v861 = vsel %vm847, %v860, %v803
    %v862 = vsel %vm849, %v861, %v807
    %v863 = vsel %vm845, %v630, %v811
    %v864 = vsel %vm847, %v863, %v815
    %v865 = vsel %vm849, %v864, %v819
    %v866 = vsel %vm845, %v734, %v823
    %v867 = vsel %vm847, %v866, %v827
    %v868 = vsel %vm849, %v867, %v831
    %v869 = vsel %vm845, %v742, %v835
    %v870 = vsel %vm847, %v869, %v839
    %v871 = vsel %vm849, %v870, %v843
    %v872 = vld [vmem:[%s6] sm:$0xff]
    %v873 = vld [vmem:[%s6 + $0x8] sm:$0xff]
    %v874 = vld [vmem:[%s6 + $0x10] sm:$0xff]
    %v875 = vld [vmem:[%s6 + $0x18] sm:$0xff]
    %v876 = vld [vmem:[%s6 + $0x20] sm:$0xff]
    %v877 = vld [vmem:[%s6 + $0x28] sm:$0xff]
    %v878 = vld [vmem:[%s6 + $0x30] sm:$0xff]
    %v879 = vld [vmem:[%s6 + $0x38] sm:$0xff]
    %v880 = vld [vmem:[%s6 + $0x40] sm:$0xff]
    %v881 = vld [vmem:[%s6 + $0x48] sm:$0xff]
    %v882 = vld [vmem:[%s6 + $0x50] sm:$0xff]
    %v883 = vld [vmem:[%s6 + $0x58] sm:$0xff]
    %v884 = vld [vmem:[%s6 + $0x60] sm:$0xff]
    %v885 = vld [vmem:[%s6 + $0x68] sm:$0xff]
    %v886 = vld [vmem:[%s6 + $0x70] sm:$0xff]
    %v887 = vld [vmem:[%s6 + $0x78] sm:$0xff]
    %v888 = vld [vmem:[%s6 + $0x80] sm:$0xff]
    %v889 = vld [vmem:[%s6 + $0x88] sm:$0xff]
    %v890 = vld [vmem:[%s6 + $0x90] sm:$0xff]
    %v891 = vld [vmem:[%s6 + $0x98] sm:$0xff]
    %v892 = vld [vmem:[%s6 + $0xa0] sm:$0xff]
    %v893 = vld [vmem:[%s6 + $0xa8] sm:$0xff]
    %v894 = vld [vmem:[%s6 + $0xb0] sm:$0xff]
    %v895 = vld [vmem:[%s6 + $0xb8] sm:$0xff]
    %v896 = vld [vmem:[%s6 + $0xc0] sm:$0xff]
    %v897 = vld [vmem:[%s6 + $0xc8] sm:$0xff]
    %v898 = vld [vmem:[%s6 + $0xd0] sm:$0xff]
    %v899 = vld [vmem:[%s6 + $0xd8] sm:$0xff]
    %v900 = vld [vmem:[%s6 + $0xe0] sm:$0xff]
    %v901 = vld [vmem:[%s6 + $0xe8] sm:$0xff]
    %v902 = vld [vmem:[%s6 + $0xf0] sm:$0xff]
    %v903 = vld [vmem:[%s6 + $0xf8] sm:$0xff]
    %v904 = vld [vmem:[%s6 + $0x100] sm:$0xff]
    %v905 = vld [vmem:[%s6 + $0x108] sm:$0xff]
    %v906 = vld [vmem:[%s6 + $0x110] sm:$0xff]
    %v907 = vld [vmem:[%s6 + $0x118] sm:$0xff]
    %v908 = vld [vmem:[%s6 + $0x120] sm:$0xff]
    %v909 = vld [vmem:[%s6 + $0x128] sm:$0xff]
    %v910 = vld [vmem:[%s6 + $0x130] sm:$0xff]
    %v911 = vld [vmem:[%s6 + $0x138] sm:$0xff]
    %v912 = vld [vmem:[%s6 + $0x140] sm:$0xff]
    %v913 = vld [vmem:[%s6 + $0x148] sm:$0xff]
    %v914 = vld [vmem:[%s6 + $0x150] sm:$0xff]
    %v915 = vld [vmem:[%s6 + $0x158] sm:$0xff]
    %v916 = vld [vmem:[%s6 + $0x160] sm:$0xff]
    %v917 = vld [vmem:[%s6 + $0x168] sm:$0xff]
    %v918 = vld [vmem:[%s6 + $0x170] sm:$0xff]
    %v919 = vld [vmem:[%s6 + $0x178] sm:$0xff]
    %v920 = vld [vmem:[%s6 + $0x180] sm:$0xff]
    %v921 = vld [vmem:[%s6 + $0x188] sm:$0xff]
    %v922 = vld [vmem:[%s6 + $0x190] sm:$0xff]
    %v923 = vld [vmem:[%s6 + $0x198] sm:$0xff]
    %v924 = vld [vmem:[%s6 + $0x1a0] sm:$0xff]
    %v925 = vld [vmem:[%s6 + $0x1a8] sm:$0xff]
    %v926 = vld [vmem:[%s6 + $0x1b0] sm:$0xff]
    %v927 = vld [vmem:[%s6 + $0x1b8] sm:$0xff]
    %v928 = vld [vmem:[%s6 + $0x1c0] sm:$0xff]
    %v929 = vld [vmem:[%s6 + $0x1c8] sm:$0xff]
    %v930 = vld [vmem:[%s6 + $0x1d0] sm:$0xff]
    %v931 = vld [vmem:[%s6 + $0x1d8] sm:$0xff]
    %v932 = vld [vmem:[%s6 + $0x1e0] sm:$0xff]
    %v933 = vld [vmem:[%s6 + $0x1e8] sm:$0xff]
    %v934 = vld [vmem:[%s6 + $0x1f0] sm:$0xff]
    %v935 = vld [vmem:[%s6 + $0x1f8] sm:$0xff]
    %v936 = vld [vmem:[%s6 + $0x200] sm:$0xff]
    %v937 = vld [vmem:[%s6 + $0x208] sm:$0xff]
    %v938 = vld [vmem:[%s6 + $0x210] sm:$0xff]
    %v939 = vld [vmem:[%s6 + $0x218] sm:$0xff]
    %v940 = vld [vmem:[%s6 + $0x220] sm:$0xff]
    %v941 = vld [vmem:[%s6 + $0x228] sm:$0xff]
    %v942 = vld [vmem:[%s6 + $0x230] sm:$0xff]
    %v943 = vld [vmem:[%s6 + $0x238] sm:$0xff]
    %v944 = vld [vmem:[%s6 + $0x240] sm:$0xff]
    %v945 = vld [vmem:[%s6 + $0x248] sm:$0xff]
    %v946 = vld [vmem:[%s6 + $0x250] sm:$0xff]
    %v947 = vld [vmem:[%s6 + $0x258] sm:$0xff]
    %v948 = vld [vmem:[%s6 + $0x260] sm:$0xff]
    %v949 = vld [vmem:[%s6 + $0x268] sm:$0xff]
    %v950 = vld [vmem:[%s6 + $0x270] sm:$0xff]
    %v951 = vld [vmem:[%s6 + $0x278] sm:$0xff]
    %v952 = vld [vmem:[%s6 + $0x280] sm:$0xff]
    %v953 = vld [vmem:[%s6 + $0x288] sm:$0xff]
    %v954 = vld [vmem:[%s6 + $0x290] sm:$0xff]
    %v955 = vld [vmem:[%s6 + $0x298] sm:$0xff]
    %v956 = vld [vmem:[%s6 + $0x2a0] sm:$0xff]
    %v957 = vld [vmem:[%s6 + $0x2a8] sm:$0xff]
    %v958 = vld [vmem:[%s6 + $0x2b0] sm:$0xff]
    %v959 = vld [vmem:[%s6 + $0x2b8] sm:$0xff]
    %v960 = vld [vmem:[%s6 + $0x2c0] sm:$0xff]
    %v961 = vld [vmem:[%s6 + $0x2c8] sm:$0xff]
    %v962 = vld [vmem:[%s6 + $0x2d0] sm:$0xff]
    %v963 = vld [vmem:[%s6 + $0x2d8] sm:$0xff]
    %v964 = vld [vmem:[%s6 + $0x2e0] sm:$0xff]
    %v965 = vld [vmem:[%s6 + $0x2e8] sm:$0xff]
    %v966 = vld [vmem:[%s6 + $0x2f0] sm:$0xff]
    %v967 = vld [vmem:[%s6 + $0x2f8] sm:$0xff]
    %v968 = vld [vmem:[%s6 + $0x300] sm:$0xff]
    %v969 = vld [vmem:[%s6 + $0x308] sm:$0xff]
    %v970 = vld [vmem:[%s6 + $0x310] sm:$0xff]
    %v971 = vld [vmem:[%s6 + $0x318] sm:$0xff]
    %v972 = vld [vmem:[%s6 + $0x320] sm:$0xff]
    %v973 = vld [vmem:[%s6 + $0x328] sm:$0xff]
    %v974 = vld [vmem:[%s6 + $0x330] sm:$0xff]
    %v975 = vld [vmem:[%s6 + $0x338] sm:$0xff]
    %v976 = vld [vmem:[%s6 + $0x340] sm:$0xff]
    %v977 = vld [vmem:[%s6 + $0x348] sm:$0xff]
    %v978 = vld [vmem:[%s6 + $0x350] sm:$0xff]
    %v979 = vld [vmem:[%s6 + $0x358] sm:$0xff]
    %v980 = vld [vmem:[%s6 + $0x360] sm:$0xff]
    %v981 = vld [vmem:[%s6 + $0x368] sm:$0xff]
    %v982 = vld [vmem:[%s6 + $0x370] sm:$0xff]
    %v983 = vld [vmem:[%s6 + $0x378] sm:$0xff]
    %v984 = vld [vmem:[%s6 + $0x380] sm:$0xff]
    %v985 = vld [vmem:[%s6 + $0x388] sm:$0xff]
    %v986 = vld [vmem:[%s6 + $0x390] sm:$0xff]
    %v987 = vld [vmem:[%s6 + $0x398] sm:$0xff]
    %v988 = vld [vmem:[%s6 + $0x3a0] sm:$0xff]
    %v989 = vld [vmem:[%s6 + $0x3a8] sm:$0xff]
    %v990 = vld [vmem:[%s6 + $0x3b0] sm:$0xff]
    %v991 = vld [vmem:[%s6 + $0x3b8] sm:$0xff]
    %v992 = vld [vmem:[%s6 + $0x3c0] sm:$0xff]
    %v993 = vld [vmem:[%s6 + $0x3c8] sm:$0xff]
    %v994 = vld [vmem:[%s6 + $0x3d0] sm:$0xff]
    %v995 = vld [vmem:[%s6 + $0x3d8] sm:$0xff]
    %v996 = vld [vmem:[%s6 + $0x3e0] sm:$0xff]
    %v997 = vld [vmem:[%s6 + $0x3e8] sm:$0xff]
    %v998 = vld [vmem:[%s6 + $0x3f0] sm:$0xff]
    %v999 = vld [vmem:[%s6 + $0x3f8] sm:$0xff]
    %v1000 = vadd.f32 %v42, %v43
    %v1001 = vld [vmem:[%s7] sm:$0xff]
    %v1002 = vld [vmem:[%s7 + $0x8] sm:$0xff]
    %v1003 = vld [vmem:[%s7 + $0x10] sm:$0xff]
    %v1004 = vld [vmem:[%s7 + $0x18] sm:$0xff]
    %v1006 = vsel %vm845, %v1000, 0
    %1008 = vmatpush.msra.mxu0 0.0
    %1009 = vmatpush.msra.mxu0 0.0
    %1010 = vmatpush.msra.mxu0 0.0
    %1011 = vmatpush.msra.mxu0 0.0
    %1012 = vmatpush.msra.mxu0 0.0
    %1013 = vmatpush.msra.mxu0 0.0
    %1014 = vmatpush.msra.mxu0 0.0
    %1015 = vmatpush.msra.mxu0 0.0
    %1016 = vmatpush.msra.mxu0 0.0
    %1017 = vmatpush.msra.mxu0 0.0
    %1018 = vmatpush.msra.mxu0 0.0
    %1019 = vmatpush.msra.mxu0 0.0
    %1020 = vmatpush.msra.mxu0 %v1004
    %1021 = vmatpush.msra.mxu0 %v1003
    %1022 = vmatpush.msra.mxu0 %v1002
    %1023 = vmatpush.msra.mxu0 %v1001
    %1024 = vmatmul.f32.gmra.mxu0 %v1006
    %v1025 = vpop.f32.mrf.mxu0
    %v1026 = vadd.f32 0.0, %v1025
    %1027 = vdwg.mxu0
    %1028 = vmatpush.msra.mxu0 %v887
    %1029 = vmatpush.msra.mxu0 %v886
    %1030 = vmatpush.msra.mxu0 %v885
    %1031 = vmatpush.msra.mxu0 %v884
    %1032 = vmatpush.msra.mxu0 %v883
    %1033 = vmatpush.msra.mxu0 %v882
    %1034 = vmatpush.msra.mxu0 %v881
    %1035 = vmatpush.msra.mxu0 %v880
    %1036 = vmatpush.msra.mxu0 %v879
    %1037 = vmatpush.msra.mxu0 %v878
    %1038 = vmatpush.msra.mxu0 %v877
    %1039 = vmatpush.msra.mxu0 %v876
    %1040 = vmatpush.msra.mxu0 %v875
    %1041 = vmatpush.msra.mxu0 %v874
    %1042 = vmatpush.msra.mxu0 %v873
    %1043 = vmatpush.msra.mxu0 %v872
    %1044 = vmatmul.f32.gmra.mxu0 %v850
    %v1045 = vpop.f32.mrf.mxu0
    %v1046 = vadd.f32 %v1026, %v1045
    %1047 = vdwg.mxu0
    %1048 = vmatpush.msra.mxu0 %v903
    %1049 = vmatpush.msra.mxu0 %v902
    %1050 = vmatpush.msra.mxu0 %v901
    %1051 = vmatpush.msra.mxu0 %v900
    %1052 = vmatpush.msra.mxu0 %v899
    %1053 = vmatpush.msra.mxu0 %v898
    %1054 = vmatpush.msra.mxu0 %v897
    %1055 = vmatpush.msra.mxu0 %v896
    %1056 = vmatpush.msra.mxu0 %v895
    %1057 = vmatpush.msra.mxu0 %v894
    %1058 = vmatpush.msra.mxu0 %v893
    %1059 = vmatpush.msra.mxu0 %v892
    %1060 = vmatpush.msra.mxu0 %v891
    %1061 = vmatpush.msra.mxu0 %v890
    %1062 = vmatpush.msra.mxu0 %v889
    %1063 = vmatpush.msra.mxu0 %v888
    %1064 = vmatmul.f32.gmra.mxu0 %v853
    %v1065 = vpop.f32.mrf.mxu0
    %v1066 = vadd.f32 %v1046, %v1065
    %1067 = vdwg.mxu0
    %1068 = vmatpush.msra.mxu0 %v919
    %1069 = vmatpush.msra.mxu0 %v918
    %1070 = vmatpush.msra.mxu0 %v917
    %1071 = vmatpush.msra.mxu0 %v916
    %1072 = vmatpush.msra.mxu0 %v915
    %1073 = vmatpush.msra.mxu0 %v914
    %1074 = vmatpush.msra.mxu0 %v913
    %1075 = vmatpush.msra.mxu0 %v912
    %1076 = vmatpush.msra.mxu0 %v911
    %1077 = vmatpush.msra.mxu0 %v910
    %1078 = vmatpush.msra.mxu0 %v909
    %1079 = vmatpush.msra.mxu0 %v908
    %1080 = vmatpush.msra.mxu0 %v907
    %1081 = vmatpush.msra.mxu0 %v906
    %1082 = vmatpush.msra.mxu0 %v905
    %1083 = vmatpush.msra.mxu0 %v904
    %1084 = vmatmul.f32.gmra.mxu0 %v856
    %v1085 = vpop.f32.mrf.mxu0
    %v1086 = vadd.f32 %v1066, %v1085
    %1087 = vdwg.mxu0
    %1088 = vmatpush.msra.mxu0 %v935
    %1089 = vmatpush.msra.mxu0 %v934
    %1090 = vmatpush.msra.mxu0 %v933
    %1091 = vmatpush.msra.mxu0 %v932
    %1092 = vmatpush.msra.mxu0 %v931
    %1093 = vmatpush.msra.mxu0 %v930
    %1094 = vmatpush.msra.mxu0 %v929
    %1095 = vmatpush.msra.mxu0 %v928
    %1096 = vmatpush.msra.mxu0 %v927
    %1097 = vmatpush.msra.mxu0 %v926
    %1098 = vmatpush.msra.mxu0 %v925
    %1099 = vmatpush.msra.mxu0 %v924
    %1100 = vmatpush.msra.mxu0 %v923
    %1101 = vmatpush.msra.mxu0 %v922
    %1102 = vmatpush.msra.mxu0 %v921
    %1103 = vmatpush.msra.mxu0 %v920
    %1104 = vmatmul.f32.gmra.mxu0 %v859
    %v1105 = vpop.f32.mrf.mxu0
    %v1106 = vadd.f32 %v1086, %v1105
    %1107 = vdwg.mxu0
    %1108 = vmatpush.msra.mxu0 %v951
    %1109 = vmatpush.msra.mxu0 %v950
    %1110 = vmatpush.msra.mxu0 %v949
    %1111 = vmatpush.msra.mxu0 %v948
    %1112 = vmatpush.msra.mxu0 %v947
    %1113 = vmatpush.msra.mxu0 %v946
    %1114 = vmatpush.msra.mxu0 %v945
    %1115 = vmatpush.msra.mxu0 %v944
    %1116 = vmatpush.msra.mxu0 %v943
    %1117 = vmatpush.msra.mxu0 %v942
    %1118 = vmatpush.msra.mxu0 %v941
    %1119 = vmatpush.msra.mxu0 %v940
    %1120 = vmatpush.msra.mxu0 %v939
    %1121 = vmatpush.msra.mxu0 %v938
    %1122 = vmatpush.msra.mxu0 %v937
    %1123 = vmatpush.msra.mxu0 %v936
    %1124 = vmatmul.f32.gmra.mxu0 %v862
    %v1125 = vpop.f32.mrf.mxu0
    %v1126 = vadd.f32 %v1106, %v1125
    %1127 = vdwg.mxu0
    %1128 = vmatpush.msra.mxu0 %v967
    %1129 = vmatpush.msra.mxu0 %v966
    %1130 = vmatpush.msra.mxu0 %v965
    %1131 = vmatpush.msra.mxu0 %v964
    %1132 = vmatpush.msra.mxu0 %v963
    %1133 = vmatpush.msra.mxu0 %v962
    %1134 = vmatpush.msra.mxu0 %v961
    %1135 = vmatpush.msra.mxu0 %v960
    %1136 = vmatpush.msra.mxu0 %v959
    %1137 = vmatpush.msra.mxu0 %v958
    %1138 = vmatpush.msra.mxu0 %v957
    %1139 = vmatpush.msra.mxu0 %v956
    %1140 = vmatpush.msra.mxu0 %v955
    %1141 = vmatpush.msra.mxu0 %v954
    %1142 = vmatpush.msra.mxu0 %v953
    %1143 = vmatpush.msra.mxu0 %v952
    %1144 = vmatmul.f32.gmra.mxu0 %v865
    %v1145 = vpop.f32.mrf.mxu0
    %v1146 = vadd.f32 %v1126, %v1145
    %1147 = vdwg.mxu0
    %1148 = vmatpush.msra.mxu0 %v983
    %1149 = vmatpush.msra.mxu0 %v982
    %1150 = vmatpush.msra.mxu0 %v981
    %1151 = vmatpush.msra.mxu0 %v980
    %1152 = vmatpush.msra.mxu0 %v979
    %1153 = vmatpush.msra.mxu0 %v978
    %1154 = vmatpush.msra.mxu0 %v977
    %1155 = vmatpush.msra.mxu0 %v976
    %1156 = vmatpush.msra.mxu0 %v975
    %1157 = vmatpush.msra.mxu0 %v974
    %1158 = vmatpush.msra.mxu0 %v973
    %1159 = vmatpush.msra.mxu0 %v972
    %1160 = vmatpush.msra.mxu0 %v971
    %1161 = vmatpush.msra.mxu0 %v970
    %1162 = vmatpush.msra.mxu0 %v969
    %1163 = vmatpush.msra.mxu0 %v968
    %1164 = vmatmul.f32.gmra.mxu0 %v868
    %v1165 = vpop.f32.mrf.mxu0
    %v1166 = vadd.f32 %v1146, %v1165
    %1167 = vdwg.mxu0
    %1168 = vmatpush.msra.mxu0 %v999
    %1169 = vmatpush.msra.mxu0 %v998
    %1170 = vmatpush.msra.mxu0 %v997
    %1171 = vmatpush.msra.mxu0 %v996
    %1172 = vmatpush.msra.mxu0 %v995
    %1173 = vmatpush.msra.mxu0 %v994
    %1174 = vmatpush.msra.mxu0 %v993
    %1175 = vmatpush.msra.mxu0 %v992
    %1176 = vmatpush.msra.mxu0 %v991
    %1177 = vmatpush.msra.mxu0 %v990
    %1178 = vmatpush.msra.mxu0 %v989
    %1179 = vmatpush.msra.mxu0 %v988
    %1180 = vmatpush.msra.mxu0 %v987
    %1181 = vmatpush.msra.mxu0 %v986
    %1182 = vmatpush.msra.mxu0 %v985
    %1183 = vmatpush.msra.mxu0 %v984
    %1184 = vmatmul.f32.gmra.mxu0 %v871
    %v1185 = vpop.f32.mrf.mxu0
    %v1186 = vadd.f32 %v1166, %v1185
    %1187 = vdwg.mxu0
    %v1188 = vld [vmem:[%s8] sm:$0x1]
    %v1190 = vperm.slane %v1188, 0
    %v1192 = vadd.f32 %v1186, %v1190
    %v1193 = vmul.f32 %v1192, 1.442695
    %v1194 = vpow.pop %v1193
    %v1195 = vld [vmem:[%s2] sm:$0xff]
    %v1196 = vld [vmem:[%s3] sm:$0xff]
    %v1197 = vmul.f32 %v1195, %v1196
    %v1198 = vld [vmem:[%s9] sm:$0x1]
    %1200 = vset.pattern.permute.xlu0 0
    %1201 = vperm.xlu0 %1200, %v1197
    %v1202 = vpop.permute.xlu0 %1201
    %v1205 = vperm.slane %v1198, 0
    %v1207 = vmul.f32 %v1202, %v1205
    %v1208 = vld [vmem:[%s11] sm:$0x1]
    %v1210 = vperm.slane %v1208, 0
    %v1212 = vadd.f32 %v1207, %v1210
    %v1213 = vld [vmem:[%s4] sm:$0xff]
    %v1214 = vld [vmem:[%s5] sm:$0xff]
    %v1215 = vadd.f32 %v1213, %v1214
    %v1216 = vld [vmem:[%s10] sm:$0xf]
    %vm1217 = vcmask 31744
    %v1219 = vsel %vm1217, %v1215, 0
    %vm1221 = vcmask 1043456
    %v1223 = vsel %vm1221, %v1216, 0
    %1225 = vmatpush.msra.mxu0 0.0
    %1226 = vmatpush.msra.mxu0 0.0
    %1227 = vmatpush.msra.mxu0 0.0
    %1228 = vmatpush.msra.mxu0 0.0
    %1229 = vmatpush.msra.mxu0 0.0
    %1230 = vmatpush.msra.mxu0 0.0
    %1231 = vmatpush.msra.mxu0 0.0
    %1232 = vmatpush.msra.mxu0 0.0
    %1233 = vmatpush.msra.mxu0 0.0
    %1234 = vmatpush.msra.mxu0 0.0
    %1235 = vmatpush.msra.mxu0 0.0
    %1236 = vmatpush.msra.mxu0 0.0
    %1237 = vmatpush.msra.mxu0 0.0
    %1238 = vmatpush.msra.mxu0 0.0
    %1239 = vmatpush.msra.mxu0 0.0
    %1240 = vmatpush.msra.mxu0 %v1223
    %1241 = vmatmul.f32.gmra.mxu0 %v1219
    %v1242 = vpop.f32.mrf.mxu0
    %v1243 = vadd.f32 0.0, %v1242
    %1244 = vdwg.mxu0
    %v1245 = vadd.f32 %v1212, %v1243
    %v1246 = vmul.f32 %v1194, %v1245
    %vm1247 = vcmask 64512
    %v1248 = vsel %vm1247, %v1246, 0.0
    %1249 = vadd.xlane.f32.xlu0 %v1248
    %v1250 = vpop.xlane.xlu0 %1249
    %v1252 = vlaneseq
    %v1253 = vand.u32 %v1252, 127
    %v1254 = vperm.slane %v1250, %v1253
    %vm1256 = vcmask 57344
    %1257 = vst.msk [vmem:[#allocation2] sm:$0x1] %vm1256, %v1254
    // Predicated region
    $region50: #{two_body_forward.1} parent=1 // pred_check
      _
    $region51: #{two_body_forward.1} parent=1 // pred_check_branch
      %1259 = sbr.rel (0) target = $region53
    $region52: #{two_body_forward.1} parent=1 // pred_region
      %1261 = vsyncadd [#allocation3], 0
      %s1263 = sshll.u32 [#allocation2], 4
      %s1264 = int_to_ptr.vmem [resolvable:$true] %s1263
      %s1265 = sshll.u32 %s12, 4
      %s1266 = int_to_ptr.hbm [resolvable:$true] %s1265
      %1268 = dma.vmem_to_hbm [thread:$0]  %s1264, 16, %s1266, [#allocation3]
    $region53: #{two_body_forward.1} parent=1 // pred_fallthru
      _
    // Predicated region
    $region54: #{two_body_forward.1} parent=1 // pred_check
      _
    $region55: #{two_body_forward.1} parent=1 // pred_check_branch
      %1270 = sbr.rel (0) target = $region57
    $region56: #{two_body_forward.1} parent=1 // pred_region
      %1272 = dma.done [#allocation3], 16
    $region57: #{two_body_forward.1} parent=1 // pred_fallthru
      _
    %1273 = vsyncpa [#allocation3], 1

</llo_original>
